<compile_context>
chip_gen: v7x
topology: tpu7x:2x2x1
jax: 0.10.0
libtpu: 0.0.40
codegen_flags: <defaults>
</compile_context>

<pallas_src>
import functools

import jax
import jax.numpy as jnp
from jax.experimental import pallas as pl
from jax.experimental.pallas import tpu as pltpu


def _round_up(n, m):
    return ((n + m - 1) // m) * m


@functools.cache
def _expm1_lowers_on_tpu():
    """Probe once whether Mosaic lowers expm1 inside a kernel; else use exp-1."""
    def probe(x_ref, o_ref):
        o_ref[...] = jnp.expm1(x_ref[...])

    try:
        out = pl.pallas_call(
            probe, out_shape=jax.ShapeDtypeStruct((8, 128), jnp.float32)
        )(jnp.zeros((8, 128), jnp.float32))
        jax.block_until_ready(out)
        return True
    except Exception:
        return False


def _elu(v, use_expm1):
    # ELU with alpha=1.0 (PyTorch default).
    if use_expm1:
        return jnp.where(v > 0, v, jnp.expm1(v))
    return jnp.where(v > 0, v, jnp.exp(v) - 1.0)


def _pack_biases(biases):
    """Pack per-layer bias vectors as columns of one f32 slab (max_width, L)."""
    n_layers = len(biases)
    rows = _round_up(max(int(b.shape[0]) for b in biases), 8)
    slab = jnp.zeros((rows, n_layers), jnp.float32)
    for l, b in enumerate(biases):
        slab = slab.at[: b.shape[0], l].set(b.astype(jnp.float32))
    return slab


def _make_kernel(n_layers, compute_dtype, use_expm1):
    f32 = jnp.dtype(jnp.float32)
    cdt = jnp.dtype(compute_dtype)

    def kernel(*refs):
        x_ref = refs[0]                       # (in_features, TB), feature-major
        w_refs = refs[1:1 + n_layers]         # resident (out, in) weights
        b_ref = refs[1 + n_layers]            # (max_width, n_layers) bias slab
        o_ref = refs[2 + n_layers]            # (1, TB) lane-dense output block

        h = x_ref[...]
        for l in range(n_layers):
            w = w_refs[l][...]                # (d_out, d_in)
            d_out = w.shape[0]
            # MXU matmul with f32 accumulation; bias column broadcasts over
            # the TB lane dimension.
            z = jnp.dot(w, h, preferred_element_type=jnp.float32)
            z = z + b_ref[0:d_out, l:l + 1]
            if l < n_layers - 1:
                if cdt != f32:
                    z = z.astype(cdt)         # bf16 EUP/VPU path (v6e/v7x only)
                h = _elu(z, use_expm1)
            else:
                h = z                          # last Linear: no activation
        o_ref[...] = h.astype(o_ref.dtype)

    return kernel


def trainer_model_forward(x, params, *, block_rows=1024,
                          compute_dtype=jnp.float32):
    """Forward pass of TrainerModel's Sequential MLP.

    x:      (B, in_features) array.
    params: list of (W, b) per nn.Linear in torch layout:
            W (out_features, in_features), b (out_features,).
    Returns (B, out_features_last) float32.
    """
    cdt = jnp.dtype(compute_dtype)
    B, F = x.shape
    n_layers = len(params)
    out_dim = params[-1][0].shape[0]
    use_expm1 = _expm1_lowers_on_tpu()

    # Batch tile = lane dimension of the feature-major blocks -> multiple of 128.
    tb = min(_round_up(block_rows, 128), _round_up(B, 128))
    b_pad = _round_up(B, tb)
    grid = (b_pad // tb,)

    # Wrapper-side layout plumbing (XLA): pad batch to a tile multiple and
    # transpose to feature-major (in_features, b_pad).  Padded rows are sliced
    # off after the call, so no garbage leaks into the result.
    x_pad = jnp.pad(x.astype(jnp.float32), ((0, b_pad - B), (0, 0)))
    xT = x_pad.T
    if cdt != jnp.dtype(jnp.float32):
        xT = xT.astype(cdt)

    weights = [jnp.asarray(w, cdt) for (w, _) in params]
    bias_slab = _pack_biases([b for (_, b) in params])

    # x / out tiled over the batch grid; weights + bias slab use constant
    # index maps so they are DMA'd once and stay VMEM-resident across tiles.
    in_specs = [pl.BlockSpec((F, tb), lambda i: (0, i))]
    in_specs += [pl.BlockSpec(w.shape, lambda i: (0, 0)) for w in weights]
    in_specs += [pl.BlockSpec(bias_slab.shape, lambda i: (0, 0))]
    out_spec = pl.BlockSpec((out_dim, tb), lambda i: (0, i))

    kernel = _make_kernel(n_layers, cdt, use_expm1)

    yT = pl.pallas_call(
        kernel,
        out_shape=jax.ShapeDtypeStruct((out_dim, b_pad), jnp.float32),
        grid=grid,
        in_specs=in_specs,
        out_specs=out_spec,
        compiler_params=pltpu.CompilerParams(
            dimension_semantics=("parallel",),        # megacore split on v7x
            vmem_limit_bytes=32 * 1024 * 1024,        # explicit; safe on v5e/v6e/v7x
        ),
    )(xT, *weights, bias_slab)

    # Back to the torch layout (B, out_dim); drop batch padding.
    return yT[:, :B].T


def init_linear_params(key, in_features, out_features):
    """Mimics torch.nn.Linear default init (uniform +-1/sqrt(fan_in)); torch layout."""
    kw, kb = jax.random.split(key)
    bound = float(in_features) ** -0.5
    w = jax.random.uniform(kw, (out_features, in_features), jnp.float32,
                           minval=-bound, maxval=bound)
    b = jax.random.uniform(kb, (out_features,), jnp.float32,
                           minval=-bound, maxval=bound)
    return w, b


def build_default_model_params(key, in_features):
    dims = [in_features, 96, 64, 18, 10, 1]
    keys = jax.random.split(key, len(dims) - 1)
    return [init_linear_params(k, d_in, d_out)
            for k, d_in, d_out in zip(keys, dims[:-1], dims[1:])]


def reference_forward(x, params):
    use_expm1 = _expm1_lowers_on_tpu()   # match the kernel's ELU formulation
    h = x.astype(jnp.float32)
    n = len(params)
    for i, (w, b) in enumerate(params):
        h = h @ w.T + b
        if i < n - 1:
            h = _elu(h, use_expm1)
    return h


if __name__ == "__main__":
    key = jax.random.PRNGKey(0)
    k_x, k_p = jax.random.split(key)

    batch = 300          # small demo batch; non-multiple of the tile to exercise padding
    in_features = 32
    x = jax.random.normal(k_x, (batch, in_features), jnp.float32)
    params = build_default_model_params(k_p, in_features)

    # Small block_rows so the demo walks a multi-step batch grid; production
    # batches should use the default block_rows=1024 (512-2048 sweet spot).
    out = trainer_model_forward(x, params, block_rows=128)
    out = jax.block_until_ready(out)

    ref = reference_forward(x, params)
    assert out.shape == (batch, 1), out.shape
    max_err = float(jnp.max(jnp.abs(out - ref)))
    assert jnp.allclose(out, ref, atol=5e-4, rtol=5e-4), max_err

    print("KERNEL_OK")
</pallas_src>

<mosaic_0001>
module attributes {stable_mosaic.version = 11 : i64} {
  func.func @kernel(%arg0: i32, %arg1: memref<32x128xf32, #tpu.memory_space<vmem>>, %arg2: memref<96x32xf32, #tpu.memory_space<vmem>>, %arg3: memref<64x96xf32, #tpu.memory_space<vmem>>, %arg4: memref<18x64xf32, #tpu.memory_space<vmem>>, %arg5: memref<10x18xf32, #tpu.memory_space<vmem>>, %arg6: memref<1x10xf32, #tpu.memory_space<vmem>>, %arg7: memref<96x5xf32, #tpu.memory_space<vmem>>, %arg8: memref<1x128xf32, #tpu.memory_space<vmem>>) attributes {dimension_semantics = [#tpu.dimension_semantics<parallel>], iteration_bounds = array<i64: 3>, scalar_prefetch = 0 : i64, scratch_operands = 0 : i64, tpu.core_type = #tpu.core_type<tc>, window_params = [{transform_indices = @transform_0, window_bounds = array<i64: 32, 128>}, {pipeline_mode = #tpu.pipeline_mode<synchronous>, transform_indices = @transform_1, window_bounds = array<i64: 96, 32>}, {pipeline_mode = #tpu.pipeline_mode<synchronous>, transform_indices = @transform_2, window_bounds = array<i64: 64, 96>}, {pipeline_mode = #tpu.pipeline_mode<synchronous>, transform_indices = @transform_3, window_bounds = array<i64: 18, 64>}, {pipeline_mode = #tpu.pipeline_mode<synchronous>, transform_indices = @transform_4, window_bounds = array<i64: 10, 18>}, {pipeline_mode = #tpu.pipeline_mode<synchronous>, transform_indices = @transform_5, window_bounds = array<i64: 1, 10>}, {pipeline_mode = #tpu.pipeline_mode<synchronous>, transform_indices = @transform_6, window_bounds = array<i64: 96, 5>}, {transform_indices = @transform_7, window_bounds = array<i64: 1, 128>}]} {
    %c0 = arith.constant 0 : index
    %c0_0 = arith.constant 0 : index
    %0 = vector.load %arg1[%c0, %c0_0] : memref<32x128xf32, #tpu.memory_space<vmem>>, vector<32x128xf32>
    %c0_1 = arith.constant 0 : index
    %c0_2 = arith.constant 0 : index
    %1 = vector.load %arg2[%c0_1, %c0_2] : memref<96x32xf32, #tpu.memory_space<vmem>>, vector<96x32xf32>
    %cst = arith.constant dense<0.000000e+00> : vector<96x128xf32>
    %2 = tpu.matmul %1, %0, %cst {dimension_numbers = #tpu.dot_dimension_numbers<[1], [0], [0], [1], [0, 0, 1, 1], [], []>} : vector<96x32xf32>, vector<32x128xf32>, vector<96x128xf32> -> vector<96x128xf32>
    %c0_3 = arith.constant 0 : index
    %c0_4 = arith.constant 0 : index
    %3 = vector.load %arg7[%c0_3, %c0_4] : memref<96x5xf32, #tpu.memory_space<vmem>>, vector<96x1xf32>
    %4 = vector.broadcast %3 : vector<96x1xf32> to vector<96x128xf32>
    %5 = arith.addf %2, %4 : vector<96x128xf32>
    %cst_5 = arith.constant 0.000000e+00 : f32
    %6 = vector.broadcast %cst_5 : f32 to vector<96x128xf32>
    %7 = arith.cmpf ogt, %5, %6 : vector<96x128xf32>
    %8 = math.exp %5 : vector<96x128xf32>
    %cst_6 = arith.constant 1.000000e+00 : f32
    %9 = vector.broadcast %cst_6 : f32 to vector<96x128xf32>
    %10 = arith.subf %8, %9 : vector<96x128xf32>
    %11 = arith.select %7, %5, %10 : vector<96x128xi1>, vector<96x128xf32>
    %c0_7 = arith.constant 0 : index
    %c0_8 = arith.constant 0 : index
    %12 = vector.load %arg3[%c0_7, %c0_8] : memref<64x96xf32, #tpu.memory_space<vmem>>, vector<64x96xf32>
    %cst_9 = arith.constant dense<0.000000e+00> : vector<64x128xf32>
    %13 = tpu.matmul %12, %11, %cst_9 {dimension_numbers = #tpu.dot_dimension_numbers<[1], [0], [0], [1], [0, 0, 1, 1], [], []>} : vector<64x96xf32>, vector<96x128xf32>, vector<64x128xf32> -> vector<64x128xf32>
    %c0_10 = arith.constant 0 : index
    %c1 = arith.constant 1 : index
    %14 = vector.load %arg7[%c0_10, %c1] : memref<96x5xf32, #tpu.memory_space<vmem>>, vector<64x1xf32>
    %15 = vector.broadcast %14 : vector<64x1xf32> to vector<64x128xf32>
    %16 = arith.addf %13, %15 : vector<64x128xf32>
    %cst_11 = arith.constant 0.000000e+00 : f32
    %17 = vector.broadcast %cst_11 : f32 to vector<64x128xf32>
    %18 = arith.cmpf ogt, %16, %17 : vector<64x128xf32>
    %19 = math.exp %16 : vector<64x128xf32>
    %cst_12 = arith.constant 1.000000e+00 : f32
    %20 = vector.broadcast %cst_12 : f32 to vector<64x128xf32>
    %21 = arith.subf %19, %20 : vector<64x128xf32>
    %22 = arith.select %18, %16, %21 : vector<64x128xi1>, vector<64x128xf32>
    %c0_13 = arith.constant 0 : index
    %c0_14 = arith.constant 0 : index
    %23 = vector.load %arg4[%c0_13, %c0_14] : memref<18x64xf32, #tpu.memory_space<vmem>>, vector<18x64xf32>
    %cst_15 = arith.constant dense<0.000000e+00> : vector<18x128xf32>
    %24 = tpu.matmul %23, %22, %cst_15 {dimension_numbers = #tpu.dot_dimension_numbers<[1], [0], [0], [1], [0, 0, 1, 1], [], []>} : vector<18x64xf32>, vector<64x128xf32>, vector<18x128xf32> -> vector<18x128xf32>
    %c0_16 = arith.constant 0 : index
    %c2 = arith.constant 2 : index
    %25 = vector.load %arg7[%c0_16, %c2] : memref<96x5xf32, #tpu.memory_space<vmem>>, vector<18x1xf32>
    %26 = vector.broadcast %25 : vector<18x1xf32> to vector<18x128xf32>
    %27 = arith.addf %24, %26 : vector<18x128xf32>
    %cst_17 = arith.constant 0.000000e+00 : f32
    %28 = vector.broadcast %cst_17 : f32 to vector<18x128xf32>
    %29 = arith.cmpf ogt, %27, %28 : vector<18x128xf32>
    %30 = math.exp %27 : vector<18x128xf32>
    %cst_18 = arith.constant 1.000000e+00 : f32
    %31 = vector.broadcast %cst_18 : f32 to vector<18x128xf32>
    %32 = arith.subf %30, %31 : vector<18x128xf32>
    %33 = arith.select %29, %27, %32 : vector<18x128xi1>, vector<18x128xf32>
    %c0_19 = arith.constant 0 : index
    %c0_20 = arith.constant 0 : index
    %34 = vector.load %arg5[%c0_19, %c0_20] : memref<10x18xf32, #tpu.memory_space<vmem>>, vector<10x18xf32>
    %cst_21 = arith.constant dense<0.000000e+00> : vector<10x128xf32>
    %35 = tpu.matmul %34, %33, %cst_21 {dimension_numbers = #tpu.dot_dimension_numbers<[1], [0], [0], [1], [0, 0, 1, 1], [], []>} : vector<10x18xf32>, vector<18x128xf32>, vector<10x128xf32> -> vector<10x128xf32>
    %c0_22 = arith.constant 0 : index
    %c3 = arith.constant 3 : index
    %36 = vector.load %arg7[%c0_22, %c3] : memref<96x5xf32, #tpu.memory_space<vmem>>, vector<10x1xf32>
    %37 = vector.broadcast %36 : vector<10x1xf32> to vector<10x128xf32>
    %38 = arith.addf %35, %37 : vector<10x128xf32>
    %cst_23 = arith.constant 0.000000e+00 : f32
    %39 = vector.broadcast %cst_23 : f32 to vector<10x128xf32>
    %40 = arith.cmpf ogt, %38, %39 : vector<10x128xf32>
    %41 = math.exp %38 : vector<10x128xf32>
    %cst_24 = arith.constant 1.000000e+00 : f32
    %42 = vector.broadcast %cst_24 : f32 to vector<10x128xf32>
    %43 = arith.subf %41, %42 : vector<10x128xf32>
    %44 = arith.select %40, %38, %43 : vector<10x128xi1>, vector<10x128xf32>
    %c0_25 = arith.constant 0 : index
    %c0_26 = arith.constant 0 : index
    %45 = vector.load %arg6[%c0_25, %c0_26] : memref<1x10xf32, #tpu.memory_space<vmem>>, vector<1x10xf32>
    %cst_27 = arith.constant dense<0.000000e+00> : vector<1x128xf32>
    %46 = tpu.matmul %45, %44, %cst_27 {dimension_numbers = #tpu.dot_dimension_numbers<[1], [0], [0], [1], [0, 0, 1, 1], [], []>} : vector<1x10xf32>, vector<10x128xf32>, vector<1x128xf32> -> vector<1x128xf32>
    %c0_28 = arith.constant 0 : index
    %c4 = arith.constant 4 : index
    %47 = vector.load %arg7[%c0_28, %c4] : memref<96x5xf32, #tpu.memory_space<vmem>>, vector<1x1xf32>
    %48 = vector.broadcast %47 : vector<1x1xf32> to vector<1x128xf32>
    %49 = arith.addf %46, %48 : vector<1x128xf32>
    %c0_29 = arith.constant 0 : index
    %c0_30 = arith.constant 0 : index
    %50 = vector.load %arg8[%c0_29, %c0_30] : memref<1x128xf32, #tpu.memory_space<vmem>>, vector<1x128xf32>
    tpu.vector_store %arg8[%c0_29, %c0_30], %49 {strides = array<i32>} : memref<1x128xf32, #tpu.memory_space<vmem>>, vector<1x128xf32>,
    return
  }
  func.func @transform_0(%arg0: i32) -> (i32, i32) {
    %c0_i32 = arith.constant 0 : i32
    %c0_i32_0 = arith.constant 0 : i32
    return %c0_i32, %arg0 : i32, i32
  }
  func.func @transform_1(%arg0: i32) -> (i32, i32) {
    %c0_i32 = arith.constant 0 : i32
    %c0_i32_0 = arith.constant 0 : i32
    %c0_i32_1 = arith.constant 0 : i32
    return %c0_i32, %c0_i32_0 : i32, i32
  }
  func.func @transform_2(%arg0: i32) -> (i32, i32) {
    %c0_i32 = arith.constant 0 : i32
    %c0_i32_0 = arith.constant 0 : i32
    %c0_i32_1 = arith.constant 0 : i32
    return %c0_i32, %c0_i32_0 : i32, i32
  }
  func.func @transform_3(%arg0: i32) -> (i32, i32) {
    %c0_i32 = arith.constant 0 : i32
    %c0_i32_0 = arith.constant 0 : i32
    %c0_i32_1 = arith.constant 0 : i32
    return %c0_i32, %c0_i32_0 : i32, i32
  }
  func.func @transform_4(%arg0: i32) -> (i32, i32) {
    %c0_i32 = arith.constant 0 : i32
    %c0_i32_0 = arith.constant 0 : i32
    %c0_i32_1 = arith.constant 0 : i32
    return %c0_i32, %c0_i32_0 : i32, i32
  }
  func.func @transform_5(%arg0: i32) -> (i32, i32) {
    %c0_i32 = arith.constant 0 : i32
    %c0_i32_0 = arith.constant 0 : i32
    %c0_i32_1 = arith.constant 0 : i32
    return %c0_i32, %c0_i32_0 : i32, i32
  }
  func.func @transform_6(%arg0: i32) -> (i32, i32) {
    %c0_i32 = arith.constant 0 : i32
    %c0_i32_0 = arith.constant 0 : i32
    %c0_i32_1 = arith.constant 0 : i32
    return %c0_i32, %c0_i32_0 : i32, i32
  }
  func.func @transform_7(%arg0: i32) -> (i32, i32) {
    %c0_i32 = arith.constant 0 : i32
    %c0_i32_0 = arith.constant 0 : i32
    return %c0_i32, %arg0 : i32, i32
  }
}

</mosaic_0001>

<llo_original>
// kernel: tpu_custom_call.1
$region0: #{tpu_custom_call.1}
  #allocation0 [shape = 'u32[]', space=smem, size = 0x4, offset = 0x4, fixed_abs, tag = 'smem constant byte address 0x4 - core index']
  #allocation1 [shape = 'u32[144,128]{1,0:T(1,128)}', space=vmem, size = 0x12000, scoped, tag = 'internal scratch']
  %s0 = inlined_call_operand.vmem [shape: f32[32,384], index: 0, kind: input, shape index: {}]
  %s1 = inlined_call_operand.vmem [shape: f32[96,32], index: 1, kind: input, shape index: {}]
  %s2 = inlined_call_operand.vmem [shape: f32[64,96], index: 2, kind: input, shape index: {}]
  %s3 = inlined_call_operand.vmem [shape: f32[18,64], index: 3, kind: input, shape index: {}]
  %s4 = inlined_call_operand.vmem [shape: f32[10,18], index: 4, kind: input, shape index: {}]
  %s5 = inlined_call_operand.vmem [shape: f32[1,10], index: 5, kind: input, shape index: {}]
  %s6 = inlined_call_operand.vmem [shape: f32[96,5], index: 6, kind: input, shape index: {}]
  %s7 = inlined_call_operand.hbm [shape: f32[1,384], index: 7, kind: output, shape index: {}]
  %s8 = sld [smem:[#allocation0]]
  $region99: #{tpu_custom_call.1} parent=0
    _
  %s10 = ssub.s32 1, %s8
  %s11 = scalar_select 0, %s10, %s8
  $region1: #{tpu_custom_call.1} parent=0
    #allocation2 [shape = 'u8[32768]{0}', space=vmem, size = 0x8000, scoped, tag = 'input window, operand 0']
    #allocation3 [shape = 'u8[1024]{0}', space=vmem, size = 0x400, scoped, tag = 'output window, operand 0']
    #allocation4 [shape = 's32[2]{0}', space=sflag, size = 0x8, scoped, tag = 'scoped memory for tpu_custom_call.1']
    %12 = vsyncpa [#allocation4], 0
    %s13 = scalar_lea.sflag [#allocation4], 1
    %14 = vsyncpa %s13, 0
    loop: start=0, step=1, limit=5
    $region2: #{tpu_custom_call.1} parent=1 // loop_pre_header
      _
    $region3: #{tpu_custom_call.1} parent=1 // loop_header
      %s16 = sphi 0, %s20
      %p17 = scmp.ge.s32.totalorder %s16, 5
      %s26 = sphi 0, %s28
      %s29 = sphi 0, %s26
      %s30 = sphi 0, %s29
      %s46 = sphi 0, %s30
      %s50 = sphi 0, %s50
      %s52 = sphi 0, %s50
      %s53 = sphi 0, %s52
      %s67 = sphi 0, %s53
      %s71 = sphi 0, %s71
      %s73 = sphi 0, %s71
      %s74 = sphi 0, %s73
      %s88 = sphi 0, %s74
      %s92 = sphi 0, %s92
      %s94 = sphi 0, %s92
      %s95 = sphi 0, %s94
      %s109 = sphi 0, %s95
      %s113 = sphi 0, %s113
      %s115 = sphi 0, %s113
      %s116 = sphi 0, %s115
      %s130 = sphi 0, %s116
      %s134 = sphi 0, %s134
      %s136 = sphi 0, %s134
      %s137 = sphi 0, %s136
      %s151 = sphi 0, %s137
      %s155 = sphi 0, %s155
      %s157 = sphi 0, %s155
      %s158 = sphi 0, %s157
      %s172 = sphi 0, %s158
      %s178 = sphi 0, %s180
      %s181 = sphi 0, %s178
      %s182 = sphi 0, %s181
      %s198 = sphi 0, %s182
    $region4: #{tpu_custom_call.1} parent=1 // loop_header_branch
      %19 = sbr.rel (%p17) target = $region8
    $region5: #{tpu_custom_call.1} parent=1 // loop_body
      %s21 = ssub.s32 %s16, 1
      %s22 = ssub.s32 %s16, 2
      %s23 = sadd.s32 %s16, 1
      %s24 = ssub.s32 %s16, %s23
      %p25 = scmp.eq.s32.totalorder %s24, 0
      %s27 = sadd.s32 %s26, 1
      %s28 = scalar_select %p25, %s26, %s27
      %p31 = pneg %p25
      %p32 = scmp.eq.s32.totalorder %s16, 2
      %p33 = por %p31, %p32
      %p34 = scmp.ne.s32.totalorder %s26, %s29
      %p35 = scmp.eq.s32.totalorder %s16, 0
      %p36 = por %p34, %p35
      %p37 = scmp.ne.s32.totalorder %s26, %s29
      %p38 = scmp.eq.s32.totalorder %s21, 2
      %p39 = por %p37, %p38
      %p40 = scmp.ne.s32.totalorder %s29, %s30
      %p41 = scmp.eq.s32.totalorder %s21, 0
      %p42 = por %p40, %p41
      %p43 = scmp.ne.s32.totalorder %s29, %s30
      %p44 = scmp.eq.s32.totalorder %s22, 2
      %p45 = por %p43, %p44
      %p47 = scmp.ne.s32.totalorder %s30, %s46
      %p48 = scmp.eq.s32.totalorder %s22, 0
      %p49 = por %p47, %p48
      %s51 = sadd.s32 %s50, 1
      %p54 = scmp.eq.s32.totalorder %s16, 2
      %p55 = scmp.ne.s32.totalorder %s50, %s52
      %p56 = scmp.eq.s32.totalorder %s16, 0
      %p57 = por %p55, %p56
      %p58 = scmp.ne.s32.totalorder %s50, %s52
      %p59 = scmp.eq.s32.totalorder %s21, 2
      %p60 = por %p58, %p59
      %p61 = scmp.ne.s32.totalorder %s52, %s53
      %p62 = scmp.eq.s32.totalorder %s21, 0
      %p63 = por %p61, %p62
      %p64 = scmp.ne.s32.totalorder %s52, %s53
      %p65 = scmp.eq.s32.totalorder %s22, 2
      %p66 = por %p64, %p65
      %p68 = scmp.ne.s32.totalorder %s53, %s67
      %p69 = scmp.eq.s32.totalorder %s22, 0
      %p70 = por %p68, %p69
      %s72 = sadd.s32 %s71, 1
      %p75 = scmp.eq.s32.totalorder %s16, 2
      %p76 = scmp.ne.s32.totalorder %s71, %s73
      %p77 = scmp.eq.s32.totalorder %s16, 0
      %p78 = por %p76, %p77
      %p79 = scmp.ne.s32.totalorder %s71, %s73
      %p80 = scmp.eq.s32.totalorder %s21, 2
      %p81 = por %p79, %p80
      %p82 = scmp.ne.s32.totalorder %s73, %s74
      %p83 = scmp.eq.s32.totalorder %s21, 0
      %p84 = por %p82, %p83
      %p85 = scmp.ne.s32.totalorder %s73, %s74
      %p86 = scmp.eq.s32.totalorder %s22, 2
      %p87 = por %p85, %p86
      %p89 = scmp.ne.s32.totalorder %s74, %s88
      %p90 = scmp.eq.s32.totalorder %s22, 0
      %p91 = por %p89, %p90
      %s93 = sadd.s32 %s92, 1
      %p96 = scmp.eq.s32.totalorder %s16, 2
      %p97 = scmp.ne.s32.totalorder %s92, %s94
      %p98 = scmp.eq.s32.totalorder %s16, 0
      %p99 = por %p97, %p98
      %p100 = scmp.ne.s32.totalorder %s92, %s94
      %p101 = scmp.eq.s32.totalorder %s21, 2
      %p102 = por %p100, %p101
      %p103 = scmp.ne.s32.totalorder %s94, %s95
      %p104 = scmp.eq.s32.totalorder %s21, 0
      %p105 = por %p103, %p104
      %p106 = scmp.ne.s32.totalorder %s94, %s95
      %p107 = scmp.eq.s32.totalorder %s22, 2
      %p108 = por %p106, %p107
      %p110 = scmp.ne.s32.totalorder %s95, %s109
      %p111 = scmp.eq.s32.totalorder %s22, 0
      %p112 = por %p110, %p111
      %s114 = sadd.s32 %s113, 1
      %p117 = scmp.eq.s32.totalorder %s16, 2
      %p118 = scmp.ne.s32.totalorder %s113, %s115
      %p119 = scmp.eq.s32.totalorder %s16, 0
      %p120 = por %p118, %p119
      %p121 = scmp.ne.s32.totalorder %s113, %s115
      %p122 = scmp.eq.s32.totalorder %s21, 2
      %p123 = por %p121, %p122
      %p124 = scmp.ne.s32.totalorder %s115, %s116
      %p125 = scmp.eq.s32.totalorder %s21, 0
      %p126 = por %p124, %p125
      %p127 = scmp.ne.s32.totalorder %s115, %s116
      %p128 = scmp.eq.s32.totalorder %s22, 2
      %p129 = por %p127, %p128
      %p131 = scmp.ne.s32.totalorder %s116, %s130
      %p132 = scmp.eq.s32.totalorder %s22, 0
      %p133 = por %p131, %p132
      %s135 = sadd.s32 %s134, 1
      %p138 = scmp.eq.s32.totalorder %s16, 2
      %p139 = scmp.ne.s32.totalorder %s134, %s136
      %p140 = scmp.eq.s32.totalorder %s16, 0
      %p141 = por %p139, %p140
      %p142 = scmp.ne.s32.totalorder %s134, %s136
      %p143 = scmp.eq.s32.totalorder %s21, 2
      %p144 = por %p142, %p143
      %p145 = scmp.ne.s32.totalorder %s136, %s137
      %p146 = scmp.eq.s32.totalorder %s21, 0
      %p147 = por %p145, %p146
      %p148 = scmp.ne.s32.totalorder %s136, %s137
      %p149 = scmp.eq.s32.totalorder %s22, 2
      %p150 = por %p148, %p149
      %p152 = scmp.ne.s32.totalorder %s137, %s151
      %p153 = scmp.eq.s32.totalorder %s22, 0
      %p154 = por %p152, %p153
      %s156 = sadd.s32 %s155, 1
      %p159 = scmp.eq.s32.totalorder %s16, 2
      %p160 = scmp.ne.s32.totalorder %s155, %s157
      %p161 = scmp.eq.s32.totalorder %s16, 0
      %p162 = por %p160, %p161
      %p163 = scmp.ne.s32.totalorder %s155, %s157
      %p164 = scmp.eq.s32.totalorder %s21, 2
      %p165 = por %p163, %p164
      %p166 = scmp.ne.s32.totalorder %s157, %s158
      %p167 = scmp.eq.s32.totalorder %s21, 0
      %p168 = por %p166, %p167
      %p169 = scmp.ne.s32.totalorder %s157, %s158
      %p170 = scmp.eq.s32.totalorder %s22, 2
      %p171 = por %p169, %p170
      %p173 = scmp.ne.s32.totalorder %s158, %s172
      %p174 = scmp.eq.s32.totalorder %s22, 0
      %p175 = por %p173, %p174
      %s176 = ssub.s32 %s16, %s23
      %p177 = scmp.eq.s32.totalorder %s176, 0
      %s179 = sadd.s32 %s178, 1
      %s180 = scalar_select %p177, %s178, %s179
      %p183 = pneg %p177
      %p184 = scmp.eq.s32.totalorder %s16, 2
      %p185 = por %p183, %p184
      %p186 = scmp.ne.s32.totalorder %s178, %s181
      %p187 = scmp.eq.s32.totalorder %s16, 0
      %p188 = por %p186, %p187
      %p189 = scmp.ne.s32.totalorder %s178, %s181
      %p190 = scmp.eq.s32.totalorder %s21, 2
      %p191 = por %p189, %p190
      %p192 = scmp.ne.s32.totalorder %s181, %s182
      %p193 = scmp.eq.s32.totalorder %s21, 0
      %p194 = por %p192, %p193
      %p195 = scmp.ne.s32.totalorder %s181, %s182
      %p196 = scmp.eq.s32.totalorder %s22, 2
      %p197 = por %p195, %p196
      %p199 = scmp.ne.s32.totalorder %s182, %s198
      %p200 = scmp.eq.s32.totalorder %s22, 0
      %p201 = por %p199, %p200
      %p202 = scmp.le.s32.totalorder 1, %s16
      %p203 = scmp.lt.s32.totalorder %s16, 4
      %p204 = pnand %p202, %p203
      %p205 = pneg %p204
      // Predicated region
      $region9: #{tpu_custom_call.1} parent=5 // pred_check
        _
      $region10: #{tpu_custom_call.1} parent=5 // pred_check_branch
        %207 = sbr.rel (%p204) target = $region12
      $region11: #{tpu_custom_call.1} parent=5 // pred_region
        %s208 = ssub.s32 %s16, 1
        // Predicated region
        $region13: #{tpu_custom_call.1} parent=11 // pred_check
          %p209 = pneg %p63
        $region14: #{tpu_custom_call.1} parent=11 // pred_check_branch
          %211 = sbr.rel (%p209) target = $region16
        $region15: #{tpu_custom_call.1} parent=11 // pred_region
          _
        $region16: #{tpu_custom_call.1} parent=11 // pred_fallthru
          _
        // Predicated region
        $region17: #{tpu_custom_call.1} parent=11 // pred_check
          %p212 = pneg %p84
        $region18: #{tpu_custom_call.1} parent=11 // pred_check_branch
          %214 = sbr.rel (%p212) target = $region20
        $region19: #{tpu_custom_call.1} parent=11 // pred_region
          _
        $region20: #{tpu_custom_call.1} parent=11 // pred_fallthru
          _
        // Predicated region
        $region21: #{tpu_custom_call.1} parent=11 // pred_check
          %p215 = pneg %p105
        $region22: #{tpu_custom_call.1} parent=11 // pred_check_branch
          %217 = sbr.rel (%p215) target = $region24
        $region23: #{tpu_custom_call.1} parent=11 // pred_region
          _
        $region24: #{tpu_custom_call.1} parent=11 // pred_fallthru
          _
        // Predicated region
        $region25: #{tpu_custom_call.1} parent=11 // pred_check
          %p218 = pneg %p126
        $region26: #{tpu_custom_call.1} parent=11 // pred_check_branch
          %220 = sbr.rel (%p218) target = $region28
        $region27: #{tpu_custom_call.1} parent=11 // pred_region
          _
        $region28: #{tpu_custom_call.1} parent=11 // pred_fallthru
          _
        // Predicated region
        $region29: #{tpu_custom_call.1} parent=11 // pred_check
          %p221 = pneg %p147
        $region30: #{tpu_custom_call.1} parent=11 // pred_check_branch
          %223 = sbr.rel (%p221) target = $region32
        $region31: #{tpu_custom_call.1} parent=11 // pred_region
          _
        $region32: #{tpu_custom_call.1} parent=11 // pred_fallthru
          _
        // Predicated region
        $region33: #{tpu_custom_call.1} parent=11 // pred_check
          %p224 = pneg %p168
        $region34: #{tpu_custom_call.1} parent=11 // pred_check_branch
          %226 = sbr.rel (%p224) target = $region36
        $region35: #{tpu_custom_call.1} parent=11 // pred_region
          _
        $region36: #{tpu_custom_call.1} parent=11 // pred_fallthru
          _
      $region12: #{tpu_custom_call.1} parent=5 // pred_fallthru
        _
      %p227 = scmp.lt.s32.totalorder %s16, 3
      // Predicated region
      $region37: #{tpu_custom_call.1} parent=5 // pred_check
        %p228 = pneg %p227
      $region38: #{tpu_custom_call.1} parent=5 // pred_check_branch
        %230 = sbr.rel (%p228) target = $region40
      $region39: #{tpu_custom_call.1} parent=5 // pred_region
        // Predicated region
        $region41: #{tpu_custom_call.1} parent=39 // pred_check
          %p231 = pneg %p36
        $region42: #{tpu_custom_call.1} parent=39 // pred_check_branch
          %233 = sbr.rel (%p231) target = $region44
        $region43: #{tpu_custom_call.1} parent=39 // pred_region
          %s234 = sand.u32 %s26, 1
          %s235 = sand.u32 %s26, 1
          %s236 = smul.addr %s235, 32
          %s237 = scalar_lea.vmem [#allocation2], %s236
          %s238 = smul.addr %s16, 8
          %s239 = scalar_lea.vmem %s0, %s238
          // Predicated region
          $region45: #{tpu_custom_call.1} parent=43 // pred_check
            _
          $region46: #{tpu_custom_call.1} parent=43 // pred_check_branch
            %241 = sbr.rel (0) target = $region48
          $region47: #{tpu_custom_call.1} parent=43 // pred_region
            // Predicated region
            $region49: #{tpu_custom_call.1} parent=47 // pred_check
              _
            $region50: #{tpu_custom_call.1} parent=47 // pred_check_branch
              %243 = sbr.rel (0) target = $region52
            $region51: #{tpu_custom_call.1} parent=47 // pred_region
              // Predicated region
              $region64: #{tpu_custom_call.1} parent=51 // pred_check
                _
              $region65: #{tpu_custom_call.1} parent=51 // pred_check_branch
                %264 = sbr.rel (0) target = $region67
              $region66: #{tpu_custom_call.1} parent=51 // pred_region
                loop: start=0, step=1, limit=1
                $region68: #{tpu_custom_call.1} parent=66 // loop_pre_header
                  _
                $region69: #{tpu_custom_call.1} parent=66 // loop_header
                  %s266 = sphi 0, %s270
                  %p267 = scmp.ge.s32.totalorder %s266, 1
                  %s271 = sphi %s239, %s239
                  %s272 = sphi %s237, %s237
                $region70: #{tpu_custom_call.1} parent=66 // loop_header_branch
                  %269 = sbr.rel (%p267) target = $region74
                $region71: #{tpu_custom_call.1} parent=66 // loop_body
                  %v273 = vld [vmem:[%s271] sm:$0xff]
                  %274 = vst [vmem:[%s272] sm:$0xff] %v273
                  %v275 = vld [vmem:[%s271 + $0x18] sm:$0xff]
                  %276 = vst [vmem:[%s272 + $0x8] sm:$0xff] %v275
                  %v277 = vld [vmem:[%s271 + $0x30] sm:$0xff]
                  %278 = vst [vmem:[%s272 + $0x10] sm:$0xff] %v277
                  %v279 = vld [vmem:[%s271 + $0x48] sm:$0xff]
                  %280 = vst [vmem:[%s272 + $0x18] sm:$0xff] %v279
                $region72: #{tpu_custom_call.1} parent=66 // loop_footer
                  %s270 = sadd.s32 1, %s266
                $region73: #{tpu_custom_call.1} parent=66 // loop_footer_branch
                  %265 = sbr.rel target = $region69
                $region74: #{tpu_custom_call.1} parent=66 // loop_exit
                  _
              $region67: #{tpu_custom_call.1} parent=51 // pred_fallthru
                _
              // Predicated region
              $region75: #{tpu_custom_call.1} parent=51 // pred_check
                _
              $region76: #{tpu_custom_call.1} parent=51 // pred_check_branch
                %282 = sbr.rel target = $region78
              $region77: #{tpu_custom_call.1} parent=51 // pred_region
                _
              $region78: #{tpu_custom_call.1} parent=51 // pred_fallthru
                _
            $region52: #{tpu_custom_call.1} parent=47 // pred_fallthru
              _
            // Predicated region
            $region53: #{tpu_custom_call.1} parent=47 // pred_check
              _
            $region54: #{tpu_custom_call.1} parent=47 // pred_check_branch
              %245 = sbr.rel target = $region56
            $region55: #{tpu_custom_call.1} parent=47 // pred_region
              loop: start=0, step=1, limit=1
              $region57: #{tpu_custom_call.1} parent=55 // loop_pre_header
                _
              $region58: #{tpu_custom_call.1} parent=55 // loop_header
                %s248 = sphi 0, %s252
                %p249 = scmp.ge.s32.totalorder %s248, 1
                %s253 = sphi %s239, %s239
                %s254 = sphi %s237, %s237
              $region59: #{tpu_custom_call.1} parent=55 // loop_header_branch
                %251 = sbr.rel (%p249) target = $region63
              $region60: #{tpu_custom_call.1} parent=55 // loop_body
                %v255 = vld [vmem:[%s253] sm:$0xff]
                %256 = vst [vmem:[%s254] sm:$0xff] %v255
                %v257 = vld [vmem:[%s253 + $0x18] sm:$0xff]
                %258 = vst [vmem:[%s254 + $0x8] sm:$0xff] %v257
                %v259 = vld [vmem:[%s253 + $0x30] sm:$0xff]
                %260 = vst [vmem:[%s254 + $0x10] sm:$0xff] %v259
                %v261 = vld [vmem:[%s253 + $0x48] sm:$0xff]
                %262 = vst [vmem:[%s254 + $0x18] sm:$0xff] %v261
              $region61: #{tpu_custom_call.1} parent=55 // loop_footer
                %s252 = sadd.s32 1, %s248
              $region62: #{tpu_custom_call.1} parent=55 // loop_footer_branch
                %247 = sbr.rel target = $region58
              $region63: #{tpu_custom_call.1} parent=55 // loop_exit
                _
            $region56: #{tpu_custom_call.1} parent=47 // pred_fallthru
              _
          $region48: #{tpu_custom_call.1} parent=43 // pred_fallthru
            _
          %283 = vnop
        $region44: #{tpu_custom_call.1} parent=39 // pred_fallthru
          _
      $region40: #{tpu_custom_call.1} parent=5 // pred_fallthru
        _
      %p284 = scmp.le.s32.totalorder 1, %s16
      %p285 = scmp.lt.s32.totalorder %s16, 4
      %p286 = pnand %p284, %p285
      %p287 = pneg %p286
      // Predicated region
      $region79: #{tpu_custom_call.1} parent=5 // pred_check
        _
      $region80: #{tpu_custom_call.1} parent=5 // pred_check_branch
        %289 = sbr.rel (%p286) target = $region82
      $region81: #{tpu_custom_call.1} parent=5 // pred_region
        %s290 = ssub.s32 %s16, 1
        %s291 = sand.u32 %s29, 1
        %s292 = sand.u32 %s29, 1
        %s293 = smul.addr %s292, 32
        %s294 = scalar_lea.vmem [#allocation2], %s293
        // Predicated region
        $region83: #{tpu_custom_call.1} parent=81 // pred_check
          %p295 = pneg %p42
        $region84: #{tpu_custom_call.1} parent=81 // pred_check_branch
          %297 = sbr.rel (%p295) target = $region86
        $region85: #{tpu_custom_call.1} parent=81 // pred_region
          _
        $region86: #{tpu_custom_call.1} parent=81 // pred_fallthru
          _
        %s298 = sand.u32 %s29, 1
        %s299 = sand.u32 %s29, 1
        %s300 = smul.addr %s299, 32
        %s301 = scalar_lea.vmem [#allocation2], %s300
        %p302 = pneg %p42
        %p303 = pneg %p39
        %p304 = pneg %p63
        %p305 = pneg %p60
        %p306 = pneg %p84
        %p307 = pneg %p81
        %p308 = pneg %p105
        %p309 = pneg %p102
        %p310 = pneg %p126
        %p311 = pneg %p123
        %p312 = pneg %p147
        %p313 = pneg %p144
        %p314 = pneg %p168
        %p315 = pneg %p165
        %p316 = pneg %p194
        %p317 = pneg %p191
        %s318 = sand.u32 %s181, 1
        %s319 = scalar_lea.sflag [#allocation4], %s318
        %s320 = sand.u32 %s181, 1
        %s321 = scalar_lea.vmem [#allocation3], %s320
        %v322 = vld [vmem:[%s294] sm:$0xff]
        %v323 = vld [vmem:[%s294 + $0x8] sm:$0xff]
        %v324 = vld [vmem:[%s294 + $0x10] sm:$0xff]
        %v325 = vld [vmem:[%s294 + $0x18] sm:$0xff]
        %v326 = vld [vmem:[%s1] sm:$0xff]
        %v327 = vld [vmem:[%s1 + $0x8] sm:$0xff]
        %v328 = vld [vmem:[%s1 + $0x10] sm:$0xff]
        %v329 = vld [vmem:[%s1 + $0x18] sm:$0xff]
        %v330 = vld [vmem:[%s1 + $0x20] sm:$0xff]
        %v331 = vld [vmem:[%s1 + $0x28] sm:$0xff]
        %v332 = vld [vmem:[%s1 + $0x30] sm:$0xff]
        %v333 = vld [vmem:[%s1 + $0x38] sm:$0xff]
        %v334 = vld [vmem:[%s1 + $0x40] sm:$0xff]
        %v335 = vld [vmem:[%s1 + $0x48] sm:$0xff]
        %v336 = vld [vmem:[%s1 + $0x50] sm:$0xff]
        %v337 = vld [vmem:[%s1 + $0x58] sm:$0xff]
        %v338 = vld [vmem:[%s6] sm:$0xff]
        %v339 = vld [vmem:[%s6 + $0x8] sm:$0xff]
        %v340 = vld [vmem:[%s6 + $0x10] sm:$0xff]
        %v341 = vld [vmem:[%s6 + $0x18] sm:$0xff]
        %v342 = vld [vmem:[%s6 + $0x20] sm:$0xff]
        %v343 = vld [vmem:[%s6 + $0x28] sm:$0xff]
        %v344 = vld [vmem:[%s6 + $0x30] sm:$0xff]
        %v345 = vld [vmem:[%s6 + $0x38] sm:$0xff]
        %v346 = vld [vmem:[%s6 + $0x40] sm:$0xff]
        %v347 = vld [vmem:[%s6 + $0x48] sm:$0xff]
        %v348 = vld [vmem:[%s6 + $0x50] sm:$0xff]
        %v349 = vld [vmem:[%s6 + $0x58] sm:$0xff]
        %351 = vset.pattern.permute.xlu0 0
        %352 = vperm.xlu0 %351, %v338
        %v353 = vpop.permute.xlu0 %352
        %356 = vset.pattern.permute.xlu0 0
        %357 = vperm.xlu0 %356, %v339
        %v358 = vpop.permute.xlu0 %357
        %361 = vset.pattern.permute.xlu0 0
        %362 = vperm.xlu0 %361, %v340
        %v363 = vpop.permute.xlu0 %362
        %366 = vset.pattern.permute.xlu0 0
        %367 = vperm.xlu0 %366, %v341
        %v368 = vpop.permute.xlu0 %367
        %371 = vset.pattern.permute.xlu0 0
        %372 = vperm.xlu0 %371, %v342
        %v373 = vpop.permute.xlu0 %372
        %376 = vset.pattern.permute.xlu0 0
        %377 = vperm.xlu0 %376, %v343
        %v378 = vpop.permute.xlu0 %377
        %381 = vset.pattern.permute.xlu0 0
        %382 = vperm.xlu0 %381, %v344
        %v383 = vpop.permute.xlu0 %382
        %386 = vset.pattern.permute.xlu0 0
        %387 = vperm.xlu0 %386, %v345
        %v388 = vpop.permute.xlu0 %387
        %391 = vset.pattern.permute.xlu0 0
        %392 = vperm.xlu0 %391, %v346
        %v393 = vpop.permute.xlu0 %392
        %396 = vset.pattern.permute.xlu0 0
        %397 = vperm.xlu0 %396, %v347
        %v398 = vpop.permute.xlu0 %397
        %401 = vset.pattern.permute.xlu0 0
        %402 = vperm.xlu0 %401, %v348
        %v403 = vpop.permute.xlu0 %402
        %406 = vset.pattern.permute.xlu0 0
        %407 = vperm.xlu0 %406, %v349
        %v408 = vpop.permute.xlu0 %407
        %vm410 = vcmask 261120
        %v412 = vsel %vm410, %v326, 0
        %v415 = vsel %vm410, %v327, 0
        %v418 = vsel %vm410, %v328, 0
        %v421 = vsel %vm410, %v329, 0
        %v424 = vsel %vm410, %v330, 0
        %v427 = vsel %vm410, %v331, 0
        %v430 = vsel %vm410, %v332, 0
        %v433 = vsel %vm410, %v333, 0
        %v436 = vsel %vm410, %v334, 0
        %v439 = vsel %vm410, %v335, 0
        %v442 = vsel %vm410, %v336, 0
        %v445 = vsel %vm410, %v337, 0
        %447 = vmatprep.subr.mxu0 0.0
        %448 = vmatpush1.msra.mxu0 %v322
        %449 = vmatprep.subr.mxu0 0.0
        %450 = vmatpush1.msra.mxu0 %v323
        %451 = vmatprep.subr.mxu0 0.0
        %452 = vmatpush1.msra.mxu0 %v324
        %453 = vmatprep.subr.mxu0 0.0
        %454 = vmatpush1.msra.mxu0 %v325
        %455 = vmatprep.subr.mxu0 0.0
        %456 = vmatpush1.msra.mxu0 0.0
        %457 = vmatprep.subr.mxu0 0.0
        %458 = vmatpush1.msra.mxu0 0.0
        %459 = vmatprep.subr.mxu0 0.0
        %460 = vmatpush1.msra.mxu0 0.0
        %461 = vmatprep.subr.mxu0 0.0
        %462 = vmatpush1.msra.mxu0 0.0
        %463 = vmatprep.subr.mxu0 0.0
        %464 = vmatpush1.msra.mxu0 0.0
        %465 = vmatprep.subr.mxu0 0.0
        %466 = vmatpush1.msra.mxu0 0.0
        %467 = vmatprep.subr.mxu0 0.0
        %468 = vmatpush1.msra.mxu0 0.0
        %469 = vmatprep.subr.mxu0 0.0
        %470 = vmatpush1.msra.mxu0 0.0
        %471 = vmatprep.subr.mxu0 0.0
        %472 = vmatpush1.msra.mxu0 0.0
        %473 = vmatprep.subr.mxu0 0.0
        %474 = vmatpush1.msra.mxu0 0.0
        %475 = vmatprep.subr.mxu0 0.0
        %476 = vmatpush1.msra.mxu0 0.0
        %477 = vmatprep.subr.mxu0 0.0
        %478 = vmatpush1.msra.mxu0 0.0
        %479 = vmatprep.subr.mxu0 0.0
        %480 = vmatpush1.msra.mxu0 0.0
        %481 = vmatprep.subr.mxu0 0.0
        %482 = vmatpush1.msra.mxu0 0.0
        %483 = vmatprep.subr.mxu0 0.0
        %484 = vmatpush1.msra.mxu0 0.0
        %485 = vmatprep.subr.mxu0 0.0
        %486 = vmatpush1.msra.mxu0 0.0
        %487 = vmatprep.subr.mxu0 0.0
        %488 = vmatpush1.msra.mxu0 0.0
        %489 = vmatprep.subr.mxu0 0.0
        %490 = vmatpush1.msra.mxu0 0.0
        %491 = vmatprep.subr.mxu0 0.0
        %492 = vmatpush1.msra.mxu0 0.0
        %493 = vmatprep.subr.mxu0 0.0
        %494 = vmatpush1.msra.mxu0 0.0
        %495 = vmatprep.subr.mxu0 0.0
        %496 = vmatpush1.msra.mxu0 0.0
        %497 = vmatprep.subr.mxu0 0.0
        %498 = vmatpush1.msra.mxu0 0.0
        %499 = vmatprep.subr.mxu0 0.0
        %500 = vmatpush1.msra.mxu0 0.0
        %501 = vmatprep.subr.mxu0 0.0
        %502 = vmatpush1.msra.mxu0 0.0
        %503 = vmatprep.subr.mxu0 0.0
        %504 = vmatpush1.msra.mxu0 0.0
        %505 = vmatprep.subr.mxu0 0.0
        %506 = vmatpush1.msra.mxu0 0.0
        %507 = vmatprep.subr.mxu0 0.0
        %508 = vmatpush1.msra.mxu0 0.0
        %509 = vmatprep.subr.mxu0 0.0
        %510 = vmatpush1.msra.mxu0 0.0
        %511 = vmatprep.mubr.f32.mxu0 0.0
        %512 = vmatmul.mubr.f32.gmra.mrb[0].mxu0 %v412
        %v513 = vpop.f32.mrb[0].mxu0
        %v514 = vadd.f32 %v353, %v513
        %v515 = vpop.f32.mrb[0].mxu0
        %516 = vmatprep.mubr.f32.mxu0 0.0
        %517 = vmatmul.mubr.f32.gmra.mrb[0].mxu0 %v415
        %v518 = vpop.f32.mrb[0].mxu0
        %v519 = vadd.f32 %v358, %v518
        %v520 = vpop.f32.mrb[0].mxu0
        %521 = vmatprep.mubr.f32.mxu0 0.0
        %522 = vmatmul.mubr.f32.gmra.mrb[0].mxu0 %v418
        %v523 = vpop.f32.mrb[0].mxu0
        %v524 = vadd.f32 %v363, %v523
        %v525 = vpop.f32.mrb[0].mxu0
        %526 = vmatprep.mubr.f32.mxu0 0.0
        %527 = vmatmul.mubr.f32.gmra.mrb[0].mxu0 %v421
        %v528 = vpop.f32.mrb[0].mxu0
        %v529 = vadd.f32 %v368, %v528
        %v530 = vpop.f32.mrb[0].mxu0
        %531 = vmatprep.mubr.f32.mxu0 0.0
        %532 = vmatmul.mubr.f32.gmra.mrb[0].mxu0 %v424
        %v533 = vpop.f32.mrb[0].mxu0
        %v534 = vadd.f32 %v373, %v533
        %v535 = vpop.f32.mrb[0].mxu0
        %536 = vmatprep.mubr.f32.mxu0 0.0
        %537 = vmatmul.mubr.f32.gmra.mrb[0].mxu0 %v427
        %v538 = vpop.f32.mrb[0].mxu0
        %v539 = vadd.f32 %v378, %v538
        %v540 = vpop.f32.mrb[0].mxu0
        %541 = vmatprep.mubr.f32.mxu0 0.0
        %542 = vmatmul.mubr.f32.gmra.mrb[0].mxu0 %v430
        %v543 = vpop.f32.mrb[0].mxu0
        %v544 = vadd.f32 %v383, %v543
        %v545 = vpop.f32.mrb[0].mxu0
        %546 = vmatprep.mubr.f32.mxu0 0.0
        %547 = vmatmul.mubr.f32.gmra.mrb[0].mxu0 %v433
        %v548 = vpop.f32.mrb[0].mxu0
        %v549 = vadd.f32 %v388, %v548
        %v550 = vpop.f32.mrb[0].mxu0
        %551 = vmatprep.mubr.f32.mxu0 0.0
        %552 = vmatmul.mubr.f32.gmra.mrb[0].mxu0 %v436
        %v553 = vpop.f32.mrb[0].mxu0
        %v554 = vadd.f32 %v393, %v553
        %v555 = vpop.f32.mrb[0].mxu0
        %556 = vmatprep.mubr.f32.mxu0 0.0
        %557 = vmatmul.mubr.f32.gmra.mrb[0].mxu0 %v439
        %v558 = vpop.f32.mrb[0].mxu0
        %v559 = vadd.f32 %v398, %v558
        %v560 = vpop.f32.mrb[0].mxu0
        %561 = vmatprep.mubr.f32.mxu0 0.0
        %562 = vmatmul.mubr.f32.gmra.mrb[0].mxu0 %v442
        %v563 = vpop.f32.mrb[0].mxu0
        %v564 = vadd.f32 %v403, %v563
        %v565 = vpop.f32.mrb[0].mxu0
        %566 = vmatprep.mubr.f32.mxu0 0.0
        %567 = vmatmul.mubr.f32.gmra.mrb[0].mxu0 %v445
        %v568 = vpop.f32.mrb[0].mxu0
        %v569 = vadd.f32 %v408, %v568
        %v570 = vpop.f32.mrb[0].mxu0
        %571 = vdwg.mxu0
        %vm572 = vcmp.gt.f32.partialorder %v514, 0.0
        %vm573 = vcmp.gt.f32.partialorder %v519, 0.0
        %vm574 = vcmp.gt.f32.partialorder %v524, 0.0
        %vm575 = vcmp.gt.f32.partialorder %v529, 0.0
        %vm576 = vcmp.gt.f32.partialorder %v534, 0.0
        %vm577 = vcmp.gt.f32.partialorder %v539, 0.0
        %vm578 = vcmp.gt.f32.partialorder %v544, 0.0
        %vm579 = vcmp.gt.f32.partialorder %v549, 0.0
        %vm580 = vcmp.gt.f32.partialorder %v554, 0.0
        %vm581 = vcmp.gt.f32.partialorder %v559, 0.0
        %vm582 = vcmp.gt.f32.partialorder %v564, 0.0
        %vm583 = vcmp.gt.f32.partialorder %v569, 0.0
        %v584 = vmul.f32 %v514, 1.442695
        %v585 = vpow.pop %v584
        %v586 = vmul.f32 %v519, 1.442695
        %v587 = vpow.pop %v586
        %v588 = vmul.f32 %v524, 1.442695
        %v589 = vpow.pop %v588
        %v590 = vmul.f32 %v529, 1.442695
        %v591 = vpow.pop %v590
        %v592 = vmul.f32 %v534, 1.442695
        %v593 = vpow.pop %v592
        %v594 = vmul.f32 %v539, 1.442695
        %v595 = vpow.pop %v594
        %v596 = vmul.f32 %v544, 1.442695
        %v597 = vpow.pop %v596
        %v598 = vmul.f32 %v549, 1.442695
        %v599 = vpow.pop %v598
        %v600 = vmul.f32 %v554, 1.442695
        %v601 = vpow.pop %v600
        %v602 = vmul.f32 %v559, 1.442695
        %v603 = vpow.pop %v602
        %v604 = vmul.f32 %v564, 1.442695
        %v605 = vpow.pop %v604
        %v606 = vmul.f32 %v569, 1.442695
        %v607 = vpow.pop %v606
        %v608 = vsub.f32 %v585, 1.0
        %v609 = vsub.f32 %v587, 1.0
        %v610 = vsub.f32 %v589, 1.0
        %v611 = vsub.f32 %v591, 1.0
        %v612 = vsub.f32 %v593, 1.0
        %v613 = vsub.f32 %v595, 1.0
        %v614 = vsub.f32 %v597, 1.0
        %v615 = vsub.f32 %v599, 1.0
        %v616 = vsub.f32 %v601, 1.0
        %v617 = vsub.f32 %v603, 1.0
        %v618 = vsub.f32 %v605, 1.0
        %v619 = vsub.f32 %v607, 1.0
        %v620 = vsel %vm572, %v514, %v608
        %v621 = vsel %vm573, %v519, %v609
        %v622 = vsel %vm574, %v524, %v610
        %v623 = vsel %vm575, %v529, %v611
        %v624 = vsel %vm576, %v534, %v612
        %v625 = vsel %vm577, %v539, %v613
        %v626 = vsel %vm578, %v544, %v614
        %v627 = vsel %vm579, %v549, %v615
        %v628 = vsel %vm580, %v554, %v616
        %v629 = vsel %vm581, %v559, %v617
        %v630 = vsel %vm582, %v564, %v618
        %v631 = vsel %vm583, %v569, %v619
        %v632 = vld [vmem:[%s2] sm:$0xff]
        %v633 = vld [vmem:[%s2 + $0x8] sm:$0xff]
        %v634 = vld [vmem:[%s2 + $0x10] sm:$0xff]
        %v635 = vld [vmem:[%s2 + $0x18] sm:$0xff]
        %v636 = vld [vmem:[%s2 + $0x20] sm:$0xff]
        %v637 = vld [vmem:[%s2 + $0x28] sm:$0xff]
        %v638 = vld [vmem:[%s2 + $0x30] sm:$0xff]
        %v639 = vld [vmem:[%s2 + $0x38] sm:$0xff]
        %v640 = vld [vmem:[%s6] sm:$0xff]
        %v641 = vld [vmem:[%s6 + $0x8] sm:$0xff]
        %v642 = vld [vmem:[%s6 + $0x10] sm:$0xff]
        %v643 = vld [vmem:[%s6 + $0x18] sm:$0xff]
        %v644 = vld [vmem:[%s6 + $0x20] sm:$0xff]
        %v645 = vld [vmem:[%s6 + $0x28] sm:$0xff]
        %v646 = vld [vmem:[%s6 + $0x30] sm:$0xff]
        %v647 = vld [vmem:[%s6 + $0x38] sm:$0xff]
        %649 = vset.pattern.permute.xlu0 1
        %650 = vperm.xlu0 %649, %v640
        %v651 = vpop.permute.xlu0 %650
        %654 = vset.pattern.permute.xlu0 1
        %655 = vperm.xlu0 %654, %v641
        %v656 = vpop.permute.xlu0 %655
        %659 = vset.pattern.permute.xlu0 1
        %660 = vperm.xlu0 %659, %v642
        %v661 = vpop.permute.xlu0 %660
        %664 = vset.pattern.permute.xlu0 1
        %665 = vperm.xlu0 %664, %v643
        %v666 = vpop.permute.xlu0 %665
        %669 = vset.pattern.permute.xlu0 1
        %670 = vperm.xlu0 %669, %v644
        %v671 = vpop.permute.xlu0 %670
        %674 = vset.pattern.permute.xlu0 1
        %675 = vperm.xlu0 %674, %v645
        %v676 = vpop.permute.xlu0 %675
        %679 = vset.pattern.permute.xlu0 1
        %680 = vperm.xlu0 %679, %v646
        %v681 = vpop.permute.xlu0 %680
        %684 = vset.pattern.permute.xlu0 1
        %685 = vperm.xlu0 %684, %v647
        %v686 = vpop.permute.xlu0 %685
        %vm688 = vcmask 785408
        %v690 = vsel %vm688, %v632, 0
        %v693 = vsel %vm688, %v633, 0
        %v696 = vsel %vm688, %v634, 0
        %v699 = vsel %vm688, %v635, 0
        %v702 = vsel %vm688, %v636, 0
        %v705 = vsel %vm688, %v637, 0
        %v708 = vsel %vm688, %v638, 0
        %v711 = vsel %vm688, %v639, 0
        %713 = vmatprep.subr.mxu0 0.0
        %714 = vmatpush1.msra.mxu0 %v620
        %715 = vmatprep.subr.mxu0 0.0
        %716 = vmatpush1.msra.mxu0 %v621
        %717 = vmatprep.subr.mxu0 0.0
        %718 = vmatpush1.msra.mxu0 %v622
        %719 = vmatprep.subr.mxu0 0.0
        %720 = vmatpush1.msra.mxu0 %v623
        %721 = vmatprep.subr.mxu0 0.0
        %722 = vmatpush1.msra.mxu0 %v624
        %723 = vmatprep.subr.mxu0 0.0
        %724 = vmatpush1.msra.mxu0 %v625
        %725 = vmatprep.subr.mxu0 0.0
        %726 = vmatpush1.msra.mxu0 %v626
        %727 = vmatprep.subr.mxu0 0.0
        %728 = vmatpush1.msra.mxu0 %v627
        %729 = vmatprep.subr.mxu0 0.0
        %730 = vmatpush1.msra.mxu0 %v628
        %731 = vmatprep.subr.mxu0 0.0
        %732 = vmatpush1.msra.mxu0 %v629
        %733 = vmatprep.subr.mxu0 0.0
        %734 = vmatpush1.msra.mxu0 %v630
        %735 = vmatprep.subr.mxu0 0.0
        %736 = vmatpush1.msra.mxu0 %v631
        %737 = vmatprep.subr.mxu0 0.0
        %738 = vmatpush1.msra.mxu0 0.0
        %739 = vmatprep.subr.mxu0 0.0
        %740 = vmatpush1.msra.mxu0 0.0
        %741 = vmatprep.subr.mxu0 0.0
        %742 = vmatpush1.msra.mxu0 0.0
        %743 = vmatprep.subr.mxu0 0.0
        %744 = vmatpush1.msra.mxu0 0.0
        %745 = vmatprep.subr.mxu0 0.0
        %746 = vmatpush1.msra.mxu0 0.0
        %747 = vmatprep.subr.mxu0 0.0
        %748 = vmatpush1.msra.mxu0 0.0
        %749 = vmatprep.subr.mxu0 0.0
        %750 = vmatpush1.msra.mxu0 0.0
        %751 = vmatprep.subr.mxu0 0.0
        %752 = vmatpush1.msra.mxu0 0.0
        %753 = vmatprep.subr.mxu0 0.0
        %754 = vmatpush1.msra.mxu0 0.0
        %755 = vmatprep.subr.mxu0 0.0
        %756 = vmatpush1.msra.mxu0 0.0
        %757 = vmatprep.subr.mxu0 0.0
        %758 = vmatpush1.msra.mxu0 0.0
        %759 = vmatprep.subr.mxu0 0.0
        %760 = vmatpush1.msra.mxu0 0.0
        %761 = vmatprep.subr.mxu0 0.0
        %762 = vmatpush1.msra.mxu0 0.0
        %763 = vmatprep.subr.mxu0 0.0
        %764 = vmatpush1.msra.mxu0 0.0
        %765 = vmatprep.subr.mxu0 0.0
        %766 = vmatpush1.msra.mxu0 0.0
        %767 = vmatprep.subr.mxu0 0.0
        %768 = vmatpush1.msra.mxu0 0.0
        %769 = vmatprep.subr.mxu0 0.0
        %770 = vmatpush1.msra.mxu0 0.0
        %771 = vmatprep.subr.mxu0 0.0
        %772 = vmatpush1.msra.mxu0 0.0
        %773 = vmatprep.subr.mxu0 0.0
        %774 = vmatpush1.msra.mxu0 0.0
        %775 = vmatprep.subr.mxu0 0.0
        %776 = vmatpush1.msra.mxu0 0.0
        %777 = vmatprep.mubr.f32.mxu0 0.0
        %778 = vmatmul.mubr.f32.gmra.mrb[0].mxu0 %v690
        %v779 = vpop.f32.mrb[0].mxu0
        %v780 = vadd.f32 %v651, %v779
        %v781 = vpop.f32.mrb[0].mxu0
        %782 = vmatprep.mubr.f32.mxu0 0.0
        %783 = vmatmul.mubr.f32.gmra.mrb[0].mxu0 %v693
        %v784 = vpop.f32.mrb[0].mxu0
        %v785 = vadd.f32 %v656, %v784
        %v786 = vpop.f32.mrb[0].mxu0
        %787 = vmatprep.mubr.f32.mxu0 0.0
        %788 = vmatmul.mubr.f32.gmra.mrb[0].mxu0 %v696
        %v789 = vpop.f32.mrb[0].mxu0
        %v790 = vadd.f32 %v661, %v789
        %v791 = vpop.f32.mrb[0].mxu0
        %792 = vmatprep.mubr.f32.mxu0 0.0
        %793 = vmatmul.mubr.f32.gmra.mrb[0].mxu0 %v699
        %v794 = vpop.f32.mrb[0].mxu0
        %v795 = vadd.f32 %v666, %v794
        %v796 = vpop.f32.mrb[0].mxu0
        %797 = vmatprep.mubr.f32.mxu0 0.0
        %798 = vmatmul.mubr.f32.gmra.mrb[0].mxu0 %v702
        %v799 = vpop.f32.mrb[0].mxu0
        %v800 = vadd.f32 %v671, %v799
        %v801 = vpop.f32.mrb[0].mxu0
        %802 = vmatprep.mubr.f32.mxu0 0.0
        %803 = vmatmul.mubr.f32.gmra.mrb[0].mxu0 %v705
        %v804 = vpop.f32.mrb[0].mxu0
        %v805 = vadd.f32 %v676, %v804
        %v806 = vpop.f32.mrb[0].mxu0
        %807 = vmatprep.mubr.f32.mxu0 0.0
        %808 = vmatmul.mubr.f32.gmra.mrb[0].mxu0 %v708
        %v809 = vpop.f32.mrb[0].mxu0
        %v810 = vadd.f32 %v681, %v809
        %v811 = vpop.f32.mrb[0].mxu0
        %812 = vmatprep.mubr.f32.mxu0 0.0
        %813 = vmatmul.mubr.f32.gmra.mrb[0].mxu0 %v711
        %v814 = vpop.f32.mrb[0].mxu0
        %v815 = vadd.f32 %v686, %v814
        %v816 = vpop.f32.mrb[0].mxu0
        %817 = vdwg.mxu0
        %vm818 = vcmp.gt.f32.partialorder %v780, 0.0
        %vm819 = vcmp.gt.f32.partialorder %v785, 0.0
        %vm820 = vcmp.gt.f32.partialorder %v790, 0.0
        %vm821 = vcmp.gt.f32.partialorder %v795, 0.0
        %vm822 = vcmp.gt.f32.partialorder %v800, 0.0
        %vm823 = vcmp.gt.f32.partialorder %v805, 0.0
        %vm824 = vcmp.gt.f32.partialorder %v810, 0.0
        %vm825 = vcmp.gt.f32.partialorder %v815, 0.0
        %v826 = vmul.f32 %v780, 1.442695
        %v827 = vpow.pop %v826
        %v828 = vmul.f32 %v785, 1.442695
        %v829 = vpow.pop %v828
        %v830 = vmul.f32 %v790, 1.442695
        %v831 = vpow.pop %v830
        %v832 = vmul.f32 %v795, 1.442695
        %v833 = vpow.pop %v832
        %v834 = vmul.f32 %v800, 1.442695
        %v835 = vpow.pop %v834
        %v836 = vmul.f32 %v805, 1.442695
        %v837 = vpow.pop %v836
        %v838 = vmul.f32 %v810, 1.442695
        %v839 = vpow.pop %v838
        %v840 = vmul.f32 %v815, 1.442695
        %v841 = vpow.pop %v840
        %v842 = vsub.f32 %v827, 1.0
        %v843 = vsub.f32 %v829, 1.0
        %v844 = vsub.f32 %v831, 1.0
        %v845 = vsub.f32 %v833, 1.0
        %v846 = vsub.f32 %v835, 1.0
        %v847 = vsub.f32 %v837, 1.0
        %v848 = vsub.f32 %v839, 1.0
        %v849 = vsub.f32 %v841, 1.0
        %v850 = vsel %vm818, %v780, %v842
        %v851 = vsel %vm819, %v785, %v843
        %v852 = vsel %vm820, %v790, %v844
        %v853 = vsel %vm821, %v795, %v845
        %v854 = vsel %vm822, %v800, %v846
        %v855 = vsel %vm823, %v805, %v847
        %v856 = vsel %vm824, %v810, %v848
        %v857 = vsel %vm825, %v815, %v849
        %v858 = vld [vmem:[%s3] sm:$0xff]
        %v859 = vld [vmem:[%s3 + $0x8] sm:$0xff]
        %v860 = vld [vmem:[%s3 + $0x10] sm:$0x3]
        %v861 = vld [vmem:[%s6] sm:$0xff]
        %v862 = vld [vmem:[%s6 + $0x8] sm:$0xff]
        %v863 = vld [vmem:[%s6 + $0x10] sm:$0x3]
        %865 = vset.pattern.permute.xlu0 2
        %866 = vperm.xlu0 %865, %v861
        %v867 = vpop.permute.xlu0 %866
        %870 = vset.pattern.permute.xlu0 2
        %871 = vperm.xlu0 %870, %v862
        %v872 = vpop.permute.xlu0 %871
        %875 = vset.pattern.permute.xlu0 2
        %876 = vperm.xlu0 %875, %v863
        %v877 = vpop.permute.xlu0 %876
        %vm879 = vcmask 523264
        %v881 = vsel %vm879, %v858, 0
        %v884 = vsel %vm879, %v859, 0
        %v887 = vsel %vm879, %v860, 0
        %889 = vmatprep.subr.mxu0 0.0
        %890 = vmatpush1.msra.mxu0 %v850
        %891 = vmatprep.subr.mxu0 0.0
        %892 = vmatpush1.msra.mxu0 %v851
        %893 = vmatprep.subr.mxu0 0.0
        %894 = vmatpush1.msra.mxu0 %v852
        %895 = vmatprep.subr.mxu0 0.0
        %896 = vmatpush1.msra.mxu0 %v853
        %897 = vmatprep.subr.mxu0 0.0
        %898 = vmatpush1.msra.mxu0 %v854
        %899 = vmatprep.subr.mxu0 0.0
        %900 = vmatpush1.msra.mxu0 %v855
        %901 = vmatprep.subr.mxu0 0.0
        %902 = vmatpush1.msra.mxu0 %v856
        %903 = vmatprep.subr.mxu0 0.0
        %904 = vmatpush1.msra.mxu0 %v857
        %905 = vmatprep.subr.mxu0 0.0
        %906 = vmatpush1.msra.mxu0 0.0
        %907 = vmatprep.subr.mxu0 0.0
        %908 = vmatpush1.msra.mxu0 0.0
        %909 = vmatprep.subr.mxu0 0.0
        %910 = vmatpush1.msra.mxu0 0.0
        %911 = vmatprep.subr.mxu0 0.0
        %912 = vmatpush1.msra.mxu0 0.0
        %913 = vmatprep.subr.mxu0 0.0
        %914 = vmatpush1.msra.mxu0 0.0
        %915 = vmatprep.subr.mxu0 0.0
        %916 = vmatpush1.msra.mxu0 0.0
        %917 = vmatprep.subr.mxu0 0.0
        %918 = vmatpush1.msra.mxu0 0.0
        %919 = vmatprep.subr.mxu0 0.0
        %920 = vmatpush1.msra.mxu0 0.0
        %921 = vmatprep.subr.mxu0 0.0
        %922 = vmatpush1.msra.mxu0 0.0
        %923 = vmatprep.subr.mxu0 0.0
        %924 = vmatpush1.msra.mxu0 0.0
        %925 = vmatprep.subr.mxu0 0.0
        %926 = vmatpush1.msra.mxu0 0.0
        %927 = vmatprep.subr.mxu0 0.0
        %928 = vmatpush1.msra.mxu0 0.0
        %929 = vmatprep.subr.mxu0 0.0
        %930 = vmatpush1.msra.mxu0 0.0
        %931 = vmatprep.subr.mxu0 0.0
        %932 = vmatpush1.msra.mxu0 0.0
        %933 = vmatprep.subr.mxu0 0.0
        %934 = vmatpush1.msra.mxu0 0.0
        %935 = vmatprep.subr.mxu0 0.0
        %936 = vmatpush1.msra.mxu0 0.0
        %937 = vmatprep.subr.mxu0 0.0
        %938 = vmatpush1.msra.mxu0 0.0
        %939 = vmatprep.subr.mxu0 0.0
        %940 = vmatpush1.msra.mxu0 0.0
        %941 = vmatprep.subr.mxu0 0.0
        %942 = vmatpush1.msra.mxu0 0.0
        %943 = vmatprep.subr.mxu0 0.0
        %944 = vmatpush1.msra.mxu0 0.0
        %945 = vmatprep.subr.mxu0 0.0
        %946 = vmatpush1.msra.mxu0 0.0
        %947 = vmatprep.subr.mxu0 0.0
        %948 = vmatpush1.msra.mxu0 0.0
        %949 = vmatprep.subr.mxu0 0.0
        %950 = vmatpush1.msra.mxu0 0.0
        %951 = vmatprep.subr.mxu0 0.0
        %952 = vmatpush1.msra.mxu0 0.0
        %953 = vmatprep.mubr.f32.mxu0 0.0
        %954 = vmatmul.mubr.f32.gmra.mrb[0].mxu0 %v881
        %v955 = vpop.f32.mrb[0].mxu0
        %v956 = vadd.f32 %v867, %v955
        %v957 = vpop.f32.mrb[0].mxu0
        %958 = vmatprep.mubr.f32.mxu0 0.0
        %959 = vmatmul.mubr.f32.gmra.mrb[0].mxu0 %v884
        %v960 = vpop.f32.mrb[0].mxu0
        %v961 = vadd.f32 %v872, %v960
        %v962 = vpop.f32.mrb[0].mxu0
        %963 = vmatprep.mubr.f32.mxu0 0.0
        %964 = vmatmul.mubr.f32.gmra.mrb[0].mxu0 %v887
        %v965 = vpop.f32.mrb[0].mxu0
        %v966 = vadd.f32 %v877, %v965
        %v967 = vpop.f32.mrb[0].mxu0
        %968 = vdwg.mxu0
        %vm969 = vcmp.gt.f32.partialorder %v956, 0.0
        %vm970 = vcmp.gt.f32.partialorder %v961, 0.0
        %vm971 = vcmp.gt.f32.partialorder %v966, 0.0
        %v972 = vmul.f32 %v956, 1.442695
        %v973 = vpow.pop %v972
        %v974 = vmul.f32 %v961, 1.442695
        %v975 = vpow.pop %v974
        %v976 = vmul.f32 %v966, 1.442695
        %v977 = vpow.pop %v976
        %v978 = vsub.f32 %v973, 1.0
        %v979 = vsub.f32 %v975, 1.0
        %v980 = vsub.f32 %v977, 1.0
        %v981 = vsel %vm969, %v956, %v978
        %v982 = vsel %vm970, %v961, %v979
        %v983 = vsel %vm971, %v966, %v980
        %v984 = vld [vmem:[%s4] sm:$0xff]
        %v985 = vld [vmem:[%s4 + $0x8] sm:$0x3]
        %v986 = vld [vmem:[%s6] sm:$0xff]
        %v987 = vld [vmem:[%s6 + $0x8] sm:$0x3]
        %989 = vset.pattern.permute.xlu0 3
        %990 = vperm.xlu0 %989, %v986
        %v991 = vpop.permute.xlu0 %990
        %994 = vset.pattern.permute.xlu0 3
        %995 = vperm.xlu0 %994, %v987
        %v996 = vpop.permute.xlu0 %995
        %vm998 = vcmask 146432
        %v1000 = vsel %vm998, %v984, 0
        %v1003 = vsel %vm998, %v985, 0
        %vm1005 = vcmask 1041408
        %v1007 = vsel %vm1005, %v983, 0
        %1009 = vmatprep.subr.mxu0 0.0
        %1010 = vmatpush1.msra.mxu0 %v981
        %1011 = vmatprep.subr.mxu0 0.0
        %1012 = vmatpush1.msra.mxu0 %v982
        %1013 = vmatprep.subr.mxu0 0.0
        %1014 = vmatpush1.msra.mxu0 %v1007
        %1015 = vmatprep.subr.mxu0 0.0
        %1016 = vmatpush1.msra.mxu0 0.0
        %1017 = vmatprep.subr.mxu0 0.0
        %1018 = vmatpush1.msra.mxu0 0.0
        %1019 = vmatprep.subr.mxu0 0.0
        %1020 = vmatpush1.msra.mxu0 0.0
        %1021 = vmatprep.subr.mxu0 0.0
        %1022 = vmatpush1.msra.mxu0 0.0
        %1023 = vmatprep.subr.mxu0 0.0
        %1024 = vmatpush1.msra.mxu0 0.0
        %1025 = vmatprep.subr.mxu0 0.0
        %1026 = vmatpush1.msra.mxu0 0.0
        %1027 = vmatprep.subr.mxu0 0.0
        %1028 = vmatpush1.msra.mxu0 0.0
        %1029 = vmatprep.subr.mxu0 0.0
        %1030 = vmatpush1.msra.mxu0 0.0
        %1031 = vmatprep.subr.mxu0 0.0
        %1032 = vmatpush1.msra.mxu0 0.0
        %1033 = vmatprep.subr.mxu0 0.0
        %1034 = vmatpush1.msra.mxu0 0.0
        %1035 = vmatprep.subr.mxu0 0.0
        %1036 = vmatpush1.msra.mxu0 0.0
        %1037 = vmatprep.subr.mxu0 0.0
        %1038 = vmatpush1.msra.mxu0 0.0
        %1039 = vmatprep.subr.mxu0 0.0
        %1040 = vmatpush1.msra.mxu0 0.0
        %1041 = vmatprep.subr.mxu0 0.0
        %1042 = vmatpush1.msra.mxu0 0.0
        %1043 = vmatprep.subr.mxu0 0.0
        %1044 = vmatpush1.msra.mxu0 0.0
        %1045 = vmatprep.subr.mxu0 0.0
        %1046 = vmatpush1.msra.mxu0 0.0
        %1047 = vmatprep.subr.mxu0 0.0
        %1048 = vmatpush1.msra.mxu0 0.0
        %1049 = vmatprep.subr.mxu0 0.0
        %1050 = vmatpush1.msra.mxu0 0.0
        %1051 = vmatprep.subr.mxu0 0.0
        %1052 = vmatpush1.msra.mxu0 0.0
        %1053 = vmatprep.subr.mxu0 0.0
        %1054 = vmatpush1.msra.mxu0 0.0
        %1055 = vmatprep.subr.mxu0 0.0
        %1056 = vmatpush1.msra.mxu0 0.0
        %1057 = vmatprep.subr.mxu0 0.0
        %1058 = vmatpush1.msra.mxu0 0.0
        %1059 = vmatprep.subr.mxu0 0.0
        %1060 = vmatpush1.msra.mxu0 0.0
        %1061 = vmatprep.subr.mxu0 0.0
        %1062 = vmatpush1.msra.mxu0 0.0
        %1063 = vmatprep.subr.mxu0 0.0
        %1064 = vmatpush1.msra.mxu0 0.0
        %1065 = vmatprep.subr.mxu0 0.0
        %1066 = vmatpush1.msra.mxu0 0.0
        %1067 = vmatprep.subr.mxu0 0.0
        %1068 = vmatpush1.msra.mxu0 0.0
        %1069 = vmatprep.subr.mxu0 0.0
        %1070 = vmatpush1.msra.mxu0 0.0
        %1071 = vmatprep.subr.mxu0 0.0
        %1072 = vmatpush1.msra.mxu0 0.0
        %1073 = vmatprep.mubr.f32.mxu0 0.0
        %1074 = vmatmul.mubr.f32.gmra.mrb[0].mxu0 %v1000
        %v1075 = vpop.f32.mrb[0].mxu0
        %v1076 = vadd.f32 %v991, %v1075
        %v1077 = vpop.f32.mrb[0].mxu0
        %1078 = vmatprep.mubr.f32.mxu0 0.0
        %1079 = vmatmul.mubr.f32.gmra.mrb[0].mxu0 %v1003
        %v1080 = vpop.f32.mrb[0].mxu0
        %v1081 = vadd.f32 %v996, %v1080
        %v1082 = vpop.f32.mrb[0].mxu0
        %1083 = vdwg.mxu0
        %vm1084 = vcmp.gt.f32.partialorder %v1076, 0.0
        %vm1085 = vcmp.gt.f32.partialorder %v1081, 0.0
        %v1086 = vmul.f32 %v1076, 1.442695
        %v1087 = vpow.pop %v1086
        %v1088 = vmul.f32 %v1081, 1.442695
        %v1089 = vpow.pop %v1088
        %v1090 = vsub.f32 %v1087, 1.0
        %v1091 = vsub.f32 %v1089, 1.0
        %v1092 = vsel %vm1084, %v1076, %v1090
        %v1093 = vsel %vm1085, %v1081, %v1091
        %v1094 = vld [vmem:[%s5] sm:$0x1]
        %v1095 = vld [vmem:[%s6] sm:$0x1]
        %1097 = vset.pattern.permute.xlu0 4
        %1098 = vperm.xlu0 %1097, %v1095
        %v1099 = vpop.permute.xlu0 %1098
        %vm1101 = vcmask 80896
        %v1103 = vsel %vm1101, %v1094, 0
        %v1106 = vsel %vm1005, %v1093, 0
        %1108 = vmatprep.subr.mxu0 0.0
        %1109 = vmatpush1.msra.mxu0 %v1092
        %1110 = vmatprep.subr.mxu0 0.0
        %1111 = vmatpush1.msra.mxu0 %v1106
        %1112 = vmatprep.subr.mxu0 0.0
        %1113 = vmatpush1.msra.mxu0 0.0
        %1114 = vmatprep.subr.mxu0 0.0
        %1115 = vmatpush1.msra.mxu0 0.0
        %1116 = vmatprep.subr.mxu0 0.0
        %1117 = vmatpush1.msra.mxu0 0.0
        %1118 = vmatprep.subr.mxu0 0.0
        %1119 = vmatpush1.msra.mxu0 0.0
        %1120 = vmatprep.subr.mxu0 0.0
        %1121 = vmatpush1.msra.mxu0 0.0
        %1122 = vmatprep.subr.mxu0 0.0
        %1123 = vmatpush1.msra.mxu0 0.0
        %1124 = vmatprep.subr.mxu0 0.0
        %1125 = vmatpush1.msra.mxu0 0.0
        %1126 = vmatprep.subr.mxu0 0.0
        %1127 = vmatpush1.msra.mxu0 0.0
        %1128 = vmatprep.subr.mxu0 0.0
        %1129 = vmatpush1.msra.mxu0 0.0
        %1130 = vmatprep.subr.mxu0 0.0
        %1131 = vmatpush1.msra.mxu0 0.0
        %1132 = vmatprep.subr.mxu0 0.0
        %1133 = vmatpush1.msra.mxu0 0.0
        %1134 = vmatprep.subr.mxu0 0.0
        %1135 = vmatpush1.msra.mxu0 0.0
        %1136 = vmatprep.subr.mxu0 0.0
        %1137 = vmatpush1.msra.mxu0 0.0
        %1138 = vmatprep.subr.mxu0 0.0
        %1139 = vmatpush1.msra.mxu0 0.0
        %1140 = vmatprep.subr.mxu0 0.0
        %1141 = vmatpush1.msra.mxu0 0.0
        %1142 = vmatprep.subr.mxu0 0.0
        %1143 = vmatpush1.msra.mxu0 0.0
        %1144 = vmatprep.subr.mxu0 0.0
        %1145 = vmatpush1.msra.mxu0 0.0
        %1146 = vmatprep.subr.mxu0 0.0
        %1147 = vmatpush1.msra.mxu0 0.0
        %1148 = vmatprep.subr.mxu0 0.0
        %1149 = vmatpush1.msra.mxu0 0.0
        %1150 = vmatprep.subr.mxu0 0.0
        %1151 = vmatpush1.msra.mxu0 0.0
        %1152 = vmatprep.subr.mxu0 0.0
        %1153 = vmatpush1.msra.mxu0 0.0
        %1154 = vmatprep.subr.mxu0 0.0
        %1155 = vmatpush1.msra.mxu0 0.0
        %1156 = vmatprep.subr.mxu0 0.0
        %1157 = vmatpush1.msra.mxu0 0.0
        %1158 = vmatprep.subr.mxu0 0.0
        %1159 = vmatpush1.msra.mxu0 0.0
        %1160 = vmatprep.subr.mxu0 0.0
        %1161 = vmatpush1.msra.mxu0 0.0
        %1162 = vmatprep.subr.mxu0 0.0
        %1163 = vmatpush1.msra.mxu0 0.0
        %1164 = vmatprep.subr.mxu0 0.0
        %1165 = vmatpush1.msra.mxu0 0.0
        %1166 = vmatprep.subr.mxu0 0.0
        %1167 = vmatpush1.msra.mxu0 0.0
        %1168 = vmatprep.subr.mxu0 0.0
        %1169 = vmatpush1.msra.mxu0 0.0
        %1170 = vmatprep.subr.mxu0 0.0
        %1171 = vmatpush1.msra.mxu0 0.0
        %1172 = vmatprep.mubr.f32.mxu0 0.0
        %1173 = vmatmul.mubr.f32.gmra.mrb[0].mxu0 %v1103
        %v1174 = vpop.f32.mrb[0].mxu0
        %v1175 = vadd.f32 %v1099, %v1174
        %v1176 = vpop.f32.mrb[0].mxu0
        %1177 = vdwg.mxu0
        %1178 = vst [vmem:[%s321] sm:$0x1] %v1175
        %s1179 = sand.u32 %s181, 1
        %s1180 = scalar_lea.sflag [#allocation4], %s1179
        %s1181 = sand.u32 %s181, 1
        %s1182 = scalar_lea.vmem [#allocation3], %s1181
        // Predicated region
        $region87: #{tpu_custom_call.1} parent=81 // pred_check
          %p1183 = pneg %p191
        $region88: #{tpu_custom_call.1} parent=81 // pred_check_branch
          %1185 = sbr.rel (%p1183) target = $region90
        $region89: #{tpu_custom_call.1} parent=81 // pred_region
          %s1187 = ssub.s32 16, 16
          %1188 = vsyncadd %s1180, %s1187
          %s1189 = smul.addr %s21, 16
          %s1190 = scalar_lea.hbm %s7, %s1189
          %s1192 = sshll.u32 %s1182, 4
          %s1193 = int_to_ptr.vmem [resolvable:$true] %s1192
          %1195 = dma.vmem_to_hbm [thread:$0]  %s1193, 16, %s1190, %s1180
        $region90: #{tpu_custom_call.1} parent=81 // pred_fallthru
          _
      $region82: #{tpu_custom_call.1} parent=5 // pred_fallthru
        _
      %p1196 = scmp.le.s32.totalorder 2, %s16
      // Predicated region
      $region91: #{tpu_custom_call.1} parent=5 // pred_check
        %p1197 = pneg %p1196
      $region92: #{tpu_custom_call.1} parent=5 // pred_check_branch
        %1199 = sbr.rel (%p1197) target = $region94
      $region93: #{tpu_custom_call.1} parent=5 // pred_region
        %s1200 = ssub.s32 %s16, 2
        // Predicated region
        $region95: #{tpu_custom_call.1} parent=93 // pred_check
          %p1201 = pneg %p197
        $region96: #{tpu_custom_call.1} parent=93 // pred_check_branch
          %1203 = sbr.rel (%p1201) target = $region98
        $region97: #{tpu_custom_call.1} parent=93 // pred_region
          %s1204 = sand.u32 %s182, 1
          %s1205 = scalar_lea.sflag [#allocation4], %s1204
          %s1206 = sand.u32 %s182, 1
          %s1207 = scalar_lea.vmem [#allocation3], %s1206
          %1208 = dma.done %s1205, 16
        $region98: #{tpu_custom_call.1} parent=93 // pred_fallthru
          _
      $region94: #{tpu_custom_call.1} parent=5 // pred_fallthru
        _
    $region6: #{tpu_custom_call.1} parent=1 // loop_footer
      %s20 = sadd.s32 1, %s16
    $region7: #{tpu_custom_call.1} parent=1 // loop_footer_branch
      %15 = sbr.rel target = $region3
    $region8: #{tpu_custom_call.1} parent=1 // loop_exit
      _
    %1209 = vsyncpa [#allocation4], 1
    %s1210 = scalar_lea.sflag [#allocation4], 1
    %1211 = vsyncpa %s1210, 1

</llo_original>
